<compile_context>
chip_gen: v7x
topology: tpu7x:2x2x1
jax: 0.10.0
libtpu: 0.0.40
codegen_flags: <defaults>
</compile_context>

<pallas_src>
import jax
import jax.numpy as jnp
from jax.experimental import pallas as pl
from jax.experimental.pallas import tpu as pltpu

NEG_SLOPE = 0.01        # nn.LeakyReLU default
BN_EPS = 1e-5           # nn.BatchNorm1d default
LANE = 128
SUBLANE_BF16 = 16       # bf16 packs 16 sublanes per vreg
MAX_TILE_B = 1024       # bigger row blocks amortize per-grid-step overhead
MIN_GRID_STEPS = 2      # v7x megacore: give both TensorCores work when possible
VMEM_SOFT_CAP = 48 * 2**20


def _round_up(x, m):
    return (x + m - 1) // m * m


# ----------------------------- Pallas kernel ------------------------------ #
def _mlp_kernel(x_ref, w1_ref, b1_ref, w2_ref, b2_ref, wo_ref, bo_ref, o_ref):
    # layer_1 (input-side BN and bn1 already folded into w1/b1) -> LeakyReLU
    h1 = jnp.dot(x_ref[...], w1_ref[...], preferred_element_type=jnp.float32)
    h1 = h1 + b1_ref[...]
    h1 = jnp.maximum(h1, NEG_SLOPE * h1)

    # layer_2 -> LeakyReLU (bn2 comes after the activation; folded into wo/bo)
    h2 = jnp.dot(h1.astype(jnp.bfloat16), w2_ref[...],
                 preferred_element_type=jnp.float32)
    h2 = h2 + b2_ref[...]
    h2 = jnp.maximum(h2, NEG_SLOPE * h2)

    # layer_out (dropout is identity at inference)
    o = jnp.dot(h2.astype(jnp.bfloat16), wo_ref[...],
                preferred_element_type=jnp.float32)
    o_ref[...] = o + bo_ref[...]


def _vmem_bytes(tile_b, in_p, h1_p, h2_p, c_p):
    """Double-buffered working-set estimate for the pallas_call."""
    x_buf = 2 * tile_b * in_p * 2                                   # bf16 x tile
    o_buf = 2 * tile_b * c_p * 4                                    # f32 out tile
    w_buf = 2 * 2 * (in_p * h1_p + h1_p * h2_p + h2_p * c_p)        # bf16 weights
    b_buf = 2 * 4 * (h1_p + h2_p + c_p)                             # f32 biases
    return x_buf + o_buf + w_buf + b_buf


def _choose_tiling(B, in_p, h1_p, h2_p, c_p):
    """Balanced batch tiles: minimal padding, >=2 grid steps when B permits,
    tile shrunk if the VMEM working set would exceed the soft cap."""
    max_tile = MAX_TILE_B
    while (_vmem_bytes(max_tile, in_p, h1_p, h2_p, c_p) > VMEM_SOFT_CAP
           and max_tile > SUBLANE_BF16):
        max_tile //= 2
    n_tiles = max(pl.cdiv(B, max_tile),
                  MIN_GRID_STEPS if B >= 2 * SUBLANE_BF16 else 1)
    tile_b = _round_up(pl.cdiv(B, n_tiles), SUBLANE_BF16)
    return tile_b, n_tiles


def mlp_pallas(x_p, w1, b1, w2, b2, wo, bo, *, tile_b):
    """x_p: (B_pad, in_pad) bf16, B_pad % tile_b == 0, feature dims % 128 == 0."""
    B_p, in_p = x_p.shape
    h1_p = w1.shape[1]
    h2_p = w2.shape[1]
    c_p = wo.shape[1]
    grid = (B_p // tile_b,)

    def row_spec(feat):            # blocked along batch
        return pl.BlockSpec((tile_b, feat), lambda i: (i, 0))

    def res_spec(r, c):            # grid-invariant -> VMEM-resident across grid
        return pl.BlockSpec((r, c), lambda i: (0, 0))

    flops = 2 * B_p * (in_p * h1_p + h1_p * h2_p + h2_p * c_p)
    bytes_accessed = (2 * (x_p.size + w1.size + w2.size + wo.size)
                      + 4 * (b1.size + b2.size + bo.size + B_p * c_p))
    vmem_limit = int(min(max(2 * _vmem_bytes(tile_b, in_p, h1_p, h2_p, c_p),
                             32 * 2**20), 64 * 2**20))

    return pl.pallas_call(
        _mlp_kernel,
        out_shape=jax.ShapeDtypeStruct((B_p, c_p), jnp.float32),
        grid_spec=pltpu.PrefetchScalarGridSpec(
            num_scalar_prefetch=0,
            grid=grid,
            in_specs=[row_spec(in_p),
                      res_spec(in_p, h1_p), res_spec(1, h1_p),
                      res_spec(h1_p, h2_p), res_spec(1, h2_p),
                      res_spec(h2_p, c_p), res_spec(1, c_p)],
            out_specs=row_spec(c_p)),
        compiler_params=pltpu.CompilerParams(
            dimension_semantics=("parallel",),
            vmem_limit_bytes=vmem_limit),
        cost_estimate=pl.CostEstimate(flops=flops, transcendentals=0,
                                      bytes_accessed=bytes_accessed),
    )(x_p, w1, b1, w2, b2, wo, bo)


# ------------------------- deterministic parameters ------------------------ #
def _linear_init(key, fan_in, fan_out):
    k_w, k_b = jax.random.split(key)
    bound = 1.0 / jnp.sqrt(fan_in)
    # stored as (in, out) so the kernel does x @ W
    w = jax.random.uniform(k_w, (fan_in, fan_out), jnp.float32, -bound, bound)
    b = jax.random.uniform(k_b, (fan_out,), jnp.float32, -bound, bound)
    return w, b


def _bn_init(key, num_feat):
    k1, k2, k3 = jax.random.split(key, 3)
    gamma = 1.0 + 0.1 * jax.random.normal(k1, (num_feat,), jnp.float32)
    beta = 0.1 * jax.random.normal(k2, (num_feat,), jnp.float32)
    running_mean = 0.1 * jax.random.normal(k3, (num_feat,), jnp.float32)
    running_var = jnp.ones((num_feat,), jnp.float32)
    scale = gamma / jnp.sqrt(running_var + BN_EPS)
    shift = beta - running_mean * scale
    return scale, shift


def init_params(key, emb_dims, num_cat, num_con, num_class, h1, h2):
    keys = jax.random.split(key, 8 + len(emb_dims))
    params = {}

    # embedding tables (padding_idx=0 -> row 0 is zeros)
    tables = []
    for i, (n, d) in enumerate(emb_dims):
        t = jax.random.normal(keys[i], (n, d), jnp.float32)
        t = t.at[0].set(0.0)
        tables.append(t)
    params["emb_tables"] = tables
    num_embs = sum(d for _, d in emb_dims)

    in_feat = num_embs + num_cat + num_con
    params["w1"], params["b1"] = _linear_init(keys[len(emb_dims) + 0], in_feat, h1)
    params["w2"], params["b2"] = _linear_init(keys[len(emb_dims) + 1], h1, h2)
    params["wo"], params["bo"] = _linear_init(keys[len(emb_dims) + 2], h2, num_class)

    cat_s, cat_b = _bn_init(keys[len(emb_dims) + 3], num_cat)
    con_s, con_b = _bn_init(keys[len(emb_dims) + 4], num_con)
    params["bn1_s"], params["bn1_b"] = _bn_init(keys[len(emb_dims) + 5], h1)
    params["bn2_s"], params["bn2_b"] = _bn_init(keys[len(emb_dims) + 6], h2)

    # input-side BN over the concatenated [emb | cat | con] feature vector
    # (embeddings untouched -> scale 1 / shift 0)
    params["in_scale"] = jnp.concatenate(
        [jnp.ones((num_embs,), jnp.float32), cat_s, con_s])
    params["in_shift"] = jnp.concatenate(
        [jnp.zeros((num_embs,), jnp.float32), cat_b, con_b])
    params["dims"] = (num_embs, num_cat, num_con, h1, h2, num_class)
    return params


def _fold_f32(params):
    """BN fold math in f32 (unpadded)."""
    in_s, in_b = params["in_scale"], params["in_shift"]
    bn1_s, bn1_b = params["bn1_s"], params["bn1_b"]
    bn2_s, bn2_b = params["bn2_s"], params["bn2_b"]
    w1 = params["w1"] * in_s[:, None] * bn1_s[None, :]
    b1 = (in_b @ params["w1"] + params["b1"]) * bn1_s + bn1_b
    w2, b2 = params["w2"], params["b2"]
    wo = params["wo"] * bn2_s[:, None]
    bo = bn2_b @ params["wo"] + params["bo"]
    return w1, b1, w2, b2, wo, bo


def fold_and_pad_params(params):
    """Fold all BN affines into the Linear weights, zero-pad every feature dim
    up to a multiple of 128 lanes (padded columns stay exactly zero through the
    LeakyReLU chain), and cast weights to bf16 (biases stay f32)."""
    num_embs, num_cat, num_con, h1, h2, num_class = params["dims"]
    in_feat = num_embs + num_cat + num_con

    w1, b1, w2, b2, wo, bo = _fold_f32(params)

    in_p = _round_up(in_feat, LANE)
    h1_p = _round_up(h1, LANE)
    h2_p = _round_up(h2, LANE)
    c_p = _round_up(num_class, LANE)

    def pad2(w, r, c):
        return jnp.pad(w, ((0, r - w.shape[0]), (0, c - w.shape[1]))
                       ).astype(jnp.bfloat16)

    def pad1(b, c):
        return jnp.pad(b, (0, c - b.shape[0])).reshape(1, c).astype(jnp.float32)

    return {
        "w1": pad2(w1, in_p, h1_p), "b1": pad1(b1, h1_p),
        "w2": pad2(w2, h1_p, h2_p), "b2": pad1(b2, h2_p),
        "wo": pad2(wo, h2_p, c_p),  "bo": pad1(bo, c_p),
        "in_feat": in_feat, "in_p": in_p,
        "h1_p": h1_p, "h2_p": h2_p, "c_p": c_p,
        "num_class": num_class,
    }


# ------------------------------ forward pass ------------------------------ #
def forward(params, folded, emb_data, cat_data, con_data):
    B = cat_data.shape[0]
    in_p, h1_p, h2_p, c_p = (folded["in_p"], folded["h1_p"],
                             folded["h2_p"], folded["c_p"])
    tile_b, n_tiles = _choose_tiling(B, in_p, h1_p, h2_p, c_p)
    B_p = tile_b * n_tiles

    # embedding lookups (JAX glue gather) + single bf16 concat that already
    # includes the zero feature-padding block; then pad batch rows once.
    emb_cols = [tab[emb_data[:, i]].astype(jnp.bfloat16)
                for i, tab in enumerate(params["emb_tables"])]
    parts = emb_cols + [cat_data.astype(jnp.bfloat16),
                        con_data.astype(jnp.bfloat16)]
    feat_pad = in_p - folded["in_feat"]
    if feat_pad:
        parts.append(jnp.zeros((B, feat_pad), jnp.bfloat16))
    x_p = jnp.concatenate(parts, axis=1)                      # (B, in_p) bf16
    if B_p > B:
        x_p = jnp.pad(x_p, ((0, B_p - B), (0, 0)))

    out_p = mlp_pallas(x_p, folded["w1"], folded["b1"],
                       folded["w2"], folded["b2"],
                       folded["wo"], folded["bo"], tile_b=tile_b)
    return out_p[:B, :folded["num_class"]]


def forward_ref(params, emb_data, cat_data, con_data):
    """Pure-JAX f32 reference mirroring the PyTorch op order exactly."""
    emb_cols = [tab[emb_data[:, i]] for i, tab in enumerate(params["emb_tables"])]
    x = jnp.concatenate(emb_cols + [cat_data, con_data], axis=1).astype(jnp.float32)
    x = x * params["in_scale"][None, :] + params["in_shift"][None, :]
    h1 = x @ params["w1"] + params["b1"]
    h1 = h1 * params["bn1_s"] + params["bn1_b"]        # layer_1 -> bn1 -> relu
    h1 = jnp.where(h1 >= 0, h1, NEG_SLOPE * h1)
    h2 = h1 @ params["w2"] + params["b2"]              # layer_2 -> relu -> bn2
    h2 = jnp.where(h2 >= 0, h2, NEG_SLOPE * h2)
    h2 = h2 * params["bn2_s"] + params["bn2_b"]
    return h2 @ params["wo"] + params["bo"]            # layer_out


def forward_folded_ref(params, emb_data, cat_data, con_data):
    """Pure-JAX f32 forward using the SAME BN fold as the kernel (no padding,
    no bf16) — validates the fold ordering at tight tolerance."""
    w1, b1, w2, b2, wo, bo = _fold_f32(params)
    emb_cols = [tab[emb_data[:, i]] for i, tab in enumerate(params["emb_tables"])]
    x = jnp.concatenate(emb_cols + [cat_data, con_data], axis=1).astype(jnp.float32)
    h1 = x @ w1 + b1
    h1 = jnp.maximum(h1, NEG_SLOPE * h1)
    h2 = h1 @ w2 + b2
    h2 = jnp.maximum(h2, NEG_SLOPE * h2)
    return h2 @ wo + bo


# ---------------------------------- main ----------------------------------- #
if __name__ == "__main__":
    # small shapes consistent with the module's __init__ signature
    B = 8
    emb_dims = [(10, 4), (8, 3)]          # -> num_embs = 7
    num_cat_feature = 4
    num_con_feature = 3
    num_hidden1, num_hidden2 = 32, 16
    num_class = 5

    key = jax.random.PRNGKey(0)
    k_par, k_emb, k_cat, k_con = jax.random.split(key, 4)

    params = init_params(k_par, emb_dims, num_cat_feature, num_con_feature,
                         num_class, num_hidden1, num_hidden2)
    folded = fold_and_pad_params(params)

    emb_data = jnp.stack(
        [jax.random.randint(jax.random.fold_in(k_emb, i), (B,), 0, n, jnp.int32)
         for i, (n, _) in enumerate(emb_dims)], axis=1)          # (B, num_emb_fields)
    cat_data = jax.random.normal(k_cat, (B, num_cat_feature), jnp.float32)
    con_data = jax.random.normal(k_con, (B, num_con_feature), jnp.float32)

    out = forward(params, folded, emb_data, cat_data, con_data)
    out = jax.block_until_ready(out)

    ref = forward_ref(params, emb_data, cat_data, con_data)
    ref_folded = forward_folded_ref(params, emb_data, cat_data, con_data)

    assert out.shape == (B, num_class)
    # fold-ordering check in pure f32 (tight tolerance)
    assert jnp.allclose(ref_folded, ref, atol=1e-4, rtol=1e-4), "BN fold mismatch"
    # bf16 kernel vs f32 reference
    assert jnp.allclose(out, ref, atol=2e-2, rtol=2e-2), "mismatch vs JAX reference"

    print("KERNEL_OK")
</pallas_src>

<mosaic_0001>
module attributes {stable_mosaic.version = 11 : i64} {
  func.func @_mlp_kernel(%arg0: i32, %arg1: memref<16x128xbf16, #tpu.memory_space<vmem>>, %arg2: memref<128x128xbf16, #tpu.memory_space<vmem>>, %arg3: memref<1x128xf32, #tpu.memory_space<vmem>>, %arg4: memref<128x128xbf16, #tpu.memory_space<vmem>>, %arg5: memref<1x128xf32, #tpu.memory_space<vmem>>, %arg6: memref<128x128xbf16, #tpu.memory_space<vmem>>, %arg7: memref<1x128xf32, #tpu.memory_space<vmem>>, %arg8: memref<16x128xf32, #tpu.memory_space<vmem>>) attributes {dimension_semantics = [#tpu.dimension_semantics<parallel>], iteration_bounds = array<i64: 1>, scalar_prefetch = 0 : i64, scratch_operands = 0 : i64, tpu.core_type = #tpu.core_type<tc>, window_params = [{transform_indices = @transform_0, window_bounds = array<i64: 16, 128>}, {pipeline_mode = #tpu.pipeline_mode<synchronous>, transform_indices = @transform_1, window_bounds = array<i64: 128, 128>}, {pipeline_mode = #tpu.pipeline_mode<synchronous>, transform_indices = @transform_2, window_bounds = array<i64: 1, 128>}, {pipeline_mode = #tpu.pipeline_mode<synchronous>, transform_indices = @transform_3, window_bounds = array<i64: 128, 128>}, {pipeline_mode = #tpu.pipeline_mode<synchronous>, transform_indices = @transform_4, window_bounds = array<i64: 1, 128>}, {pipeline_mode = #tpu.pipeline_mode<synchronous>, transform_indices = @transform_5, window_bounds = array<i64: 128, 128>}, {pipeline_mode = #tpu.pipeline_mode<synchronous>, transform_indices = @transform_6, window_bounds = array<i64: 1, 128>}, {transform_indices = @transform_7, window_bounds = array<i64: 16, 128>}]} {
    %c0 = arith.constant 0 : index
    %c0_0 = arith.constant 0 : index
    %0 = vector.load %arg1[%c0, %c0_0] : memref<16x128xbf16, #tpu.memory_space<vmem>>, vector<16x128xbf16>
    %c0_1 = arith.constant 0 : index
    %c0_2 = arith.constant 0 : index
    %1 = vector.load %arg2[%c0_1, %c0_2] : memref<128x128xbf16, #tpu.memory_space<vmem>>, vector<128x128xbf16>
    %cst = arith.constant dense<0.000000e+00> : vector<16x128xf32>
    %2 = tpu.matmul %0, %1, %cst {dimension_numbers = #tpu.dot_dimension_numbers<[1], [0], [0], [1], [0, 0, 1, 1], [], []>} : vector<16x128xbf16>, vector<128x128xbf16>, vector<16x128xf32> -> vector<16x128xf32>
    %c0_3 = arith.constant 0 : index
    %c0_4 = arith.constant 0 : index
    %3 = vector.load %arg3[%c0_3, %c0_4] : memref<1x128xf32, #tpu.memory_space<vmem>>, vector<1x128xf32>
    %4 = vector.broadcast %3 : vector<1x128xf32> to vector<16x128xf32>
    %5 = arith.addf %2, %4 : vector<16x128xf32>
    %cst_5 = arith.constant 0.00999999977 : f32
    %6 = vector.broadcast %cst_5 : f32 to vector<16x128xf32>
    %7 = arith.mulf %6, %5 : vector<16x128xf32>
    %8 = arith.maximumf %5, %7 : vector<16x128xf32>
    %9 = arith.truncf %8 : vector<16x128xf32> to vector<16x128xbf16>
    %c0_6 = arith.constant 0 : index
    %c0_7 = arith.constant 0 : index
    %10 = vector.load %arg4[%c0_6, %c0_7] : memref<128x128xbf16, #tpu.memory_space<vmem>>, vector<128x128xbf16>
    %cst_8 = arith.constant dense<0.000000e+00> : vector<16x128xf32>
    %11 = tpu.matmul %9, %10, %cst_8 {dimension_numbers = #tpu.dot_dimension_numbers<[1], [0], [0], [1], [0, 0, 1, 1], [], []>} : vector<16x128xbf16>, vector<128x128xbf16>, vector<16x128xf32> -> vector<16x128xf32>
    %c0_9 = arith.constant 0 : index
    %c0_10 = arith.constant 0 : index
    %12 = vector.load %arg5[%c0_9, %c0_10] : memref<1x128xf32, #tpu.memory_space<vmem>>, vector<1x128xf32>
    %13 = vector.broadcast %12 : vector<1x128xf32> to vector<16x128xf32>
    %14 = arith.addf %11, %13 : vector<16x128xf32>
    %cst_11 = arith.constant 0.00999999977 : f32
    %15 = vector.broadcast %cst_11 : f32 to vector<16x128xf32>
    %16 = arith.mulf %15, %14 : vector<16x128xf32>
    %17 = arith.maximumf %14, %16 : vector<16x128xf32>
    %18 = arith.truncf %17 : vector<16x128xf32> to vector<16x128xbf16>
    %c0_12 = arith.constant 0 : index
    %c0_13 = arith.constant 0 : index
    %19 = vector.load %arg6[%c0_12, %c0_13] : memref<128x128xbf16, #tpu.memory_space<vmem>>, vector<128x128xbf16>
    %cst_14 = arith.constant dense<0.000000e+00> : vector<16x128xf32>
    %20 = tpu.matmul %18, %19, %cst_14 {dimension_numbers = #tpu.dot_dimension_numbers<[1], [0], [0], [1], [0, 0, 1, 1], [], []>} : vector<16x128xbf16>, vector<128x128xbf16>, vector<16x128xf32> -> vector<16x128xf32>
    %c0_15 = arith.constant 0 : index
    %c0_16 = arith.constant 0 : index
    %21 = vector.load %arg7[%c0_15, %c0_16] : memref<1x128xf32, #tpu.memory_space<vmem>>, vector<1x128xf32>
    %22 = vector.broadcast %21 : vector<1x128xf32> to vector<16x128xf32>
    %23 = arith.addf %20, %22 : vector<16x128xf32>
    %c0_17 = arith.constant 0 : index
    %c0_18 = arith.constant 0 : index
    %24 = vector.load %arg8[%c0_17, %c0_18] : memref<16x128xf32, #tpu.memory_space<vmem>>, vector<16x128xf32>
    tpu.vector_store %arg8[%c0_17, %c0_18], %23 {strides = array<i32>} : memref<16x128xf32, #tpu.memory_space<vmem>>, vector<16x128xf32>,
    return
  }
  func.func @transform_0(%arg0: i32) -> (i32, i32) {
    %c0_i32 = arith.constant 0 : i32
    %c0_i32_0 = arith.constant 0 : i32
    return %arg0, %c0_i32 : i32, i32
  }
  func.func @transform_1(%arg0: i32) -> (i32, i32) {
    %c0_i32 = arith.constant 0 : i32
    %c0_i32_0 = arith.constant 0 : i32
    %c0_i32_1 = arith.constant 0 : i32
    return %c0_i32, %c0_i32_0 : i32, i32
  }
  func.func @transform_2(%arg0: i32) -> (i32, i32) {
    %c0_i32 = arith.constant 0 : i32
    %c0_i32_0 = arith.constant 0 : i32
    %c0_i32_1 = arith.constant 0 : i32
    return %c0_i32, %c0_i32_0 : i32, i32
  }
  func.func @transform_3(%arg0: i32) -> (i32, i32) {
    %c0_i32 = arith.constant 0 : i32
    %c0_i32_0 = arith.constant 0 : i32
    %c0_i32_1 = arith.constant 0 : i32
    return %c0_i32, %c0_i32_0 : i32, i32
  }
  func.func @transform_4(%arg0: i32) -> (i32, i32) {
    %c0_i32 = arith.constant 0 : i32
    %c0_i32_0 = arith.constant 0 : i32
    %c0_i32_1 = arith.constant 0 : i32
    return %c0_i32, %c0_i32_0 : i32, i32
  }
  func.func @transform_5(%arg0: i32) -> (i32, i32) {
    %c0_i32 = arith.constant 0 : i32
    %c0_i32_0 = arith.constant 0 : i32
    %c0_i32_1 = arith.constant 0 : i32
    return %c0_i32, %c0_i32_0 : i32, i32
  }
  func.func @transform_6(%arg0: i32) -> (i32, i32) {
    %c0_i32 = arith.constant 0 : i32
    %c0_i32_0 = arith.constant 0 : i32
    %c0_i32_1 = arith.constant 0 : i32
    return %c0_i32, %c0_i32_0 : i32, i32
  }
  func.func @transform_7(%arg0: i32) -> (i32, i32) {
    %c0_i32 = arith.constant 0 : i32
    %c0_i32_0 = arith.constant 0 : i32
    return %arg0, %c0_i32 : i32, i32
  }
}

</mosaic_0001>

<llo_original>
// kernel: tpu_custom_call.1
$region0: #{tpu_custom_call.1}
  #allocation0 [shape = 'u32[]', space=smem, size = 0x4, offset = 0x4, fixed_abs, tag = 'smem constant byte address 0x4 - core index']
  #allocation1 [shape = 'u32[144,128]{1,0:T(1,128)}', space=vmem, size = 0x12000, scoped, tag = 'internal scratch']
  %s0 = inlined_call_operand.hbm [shape: bf16[16,128], index: 0, kind: input, shape index: {}]
  %s1 = inlined_call_operand.hbm [shape: bf16[128,128], index: 1, kind: input, shape index: {}]
  %s2 = inlined_call_operand.vmem [shape: f32[1,128], index: 2, kind: input, shape index: {}]
  %s3 = inlined_call_operand.hbm [shape: bf16[128,128], index: 3, kind: input, shape index: {}]
  %s4 = inlined_call_operand.vmem [shape: f32[1,128], index: 4, kind: input, shape index: {}]
  %s5 = inlined_call_operand.hbm [shape: bf16[128,128], index: 5, kind: input, shape index: {}]
  %s6 = inlined_call_operand.vmem [shape: f32[1,128], index: 6, kind: input, shape index: {}]
  %s7 = inlined_call_operand.hbm [shape: f32[16,128], index: 7, kind: output, shape index: {}]
  %s8 = sld [smem:[#allocation0]]
  $region54: #{tpu_custom_call.1} parent=0
    _
  %s10 = ssub.s32 1, %s8
  %s11 = scalar_select 0, %s10, %s8
  $region1: #{tpu_custom_call.1} parent=0
    #allocation2 [shape = 'u8[4096]{0}', space=vmem, size = 0x1000, scoped, tag = 'input window, operand 0, single buffered']
    #allocation3 [shape = 's32[1]{0}', space=sflag, size = 0x4, scoped, tag = 'scoped memory for tpu_custom_call.1']
    #allocation4 [shape = 's32[1]{0}', space=sflag, size = 0x4, scoped, tag = 'scoped memory for tpu_custom_call.1']
    #allocation5 [shape = 'u8[32768]{0}', space=vmem, size = 0x8000, scoped, tag = 'input window, operand 1, single buffered']
    #allocation6 [shape = 's32[1]{0}', space=sflag, size = 0x4, scoped, tag = 'scoped memory for tpu_custom_call.1']
    #allocation7 [shape = 'u8[32768]{0}', space=vmem, size = 0x8000, scoped, tag = 'input window, operand 3, single buffered']
    #allocation8 [shape = 'u8[32768]{0}', space=vmem, size = 0x8000, scoped, tag = 'input window, operand 5, single buffered']
    #allocation9 [shape = 's32[1]{0}', space=sflag, size = 0x4, scoped, tag = 'scoped memory for tpu_custom_call.1']
    #allocation10 [shape = 'u8[8192]{0}', space=vmem, size = 0x2000, scoped, tag = 'output window, operand 0, single buffered']
    %12 = vsyncpa [#allocation3], 0
    %13 = vsyncpa [#allocation6], 0
    %14 = vsyncpa [#allocation9], 0
    %15 = vsyncpa [#allocation4], 0
    // Predicated region
    $region2: #{tpu_custom_call.1} parent=1 // pred_check
      _
    $region3: #{tpu_custom_call.1} parent=1 // pred_check_branch
      %17 = sbr.rel (0) target = $region5
    $region4: #{tpu_custom_call.1} parent=1 // pred_region
      %s19 = ssub.s32 128, 128
      %20 = vsyncadd [#allocation3], %s19
      %s21 = sshll.u32 [#allocation2], 4
      %s22 = int_to_ptr.vmem [resolvable:$true] %s21
      %27 = dma.hbm_to_vmem [thread:$0]  %s0, 128, %s22, [#allocation3], 64, 64, 4
    $region5: #{tpu_custom_call.1} parent=1 // pred_fallthru
      _
    // Predicated region
    $region6: #{tpu_custom_call.1} parent=1 // pred_check
      _
    $region7: #{tpu_custom_call.1} parent=1 // pred_check_branch
      %29 = sbr.rel (0) target = $region9
    $region8: #{tpu_custom_call.1} parent=1 // pred_region
      %s31 = ssub.s32 1024, 1024
      %32 = vsyncadd [#allocation6], %s31
      %s33 = sshll.u32 [#allocation5], 4
      %s34 = int_to_ptr.vmem [resolvable:$true] %s33
      %39 = dma.hbm_to_vmem [thread:$0]  %s1, 1024, %s34, [#allocation6], 64, 64, 4
    $region9: #{tpu_custom_call.1} parent=1 // pred_fallthru
      _
    // Predicated region
    $region10: #{tpu_custom_call.1} parent=1 // pred_check
      _
    $region11: #{tpu_custom_call.1} parent=1 // pred_check_branch
      %41 = sbr.rel (0) target = $region13
    $region12: #{tpu_custom_call.1} parent=1 // pred_region
      _
    $region13: #{tpu_custom_call.1} parent=1 // pred_fallthru
      _
    // Predicated region
    $region14: #{tpu_custom_call.1} parent=1 // pred_check
      _
    $region15: #{tpu_custom_call.1} parent=1 // pred_check_branch
      %43 = sbr.rel (0) target = $region17
    $region16: #{tpu_custom_call.1} parent=1 // pred_region
      %s45 = ssub.s32 1024, 1024
      %46 = vsyncadd [#allocation6], %s45
      %s47 = sshll.u32 [#allocation7], 4
      %s48 = int_to_ptr.vmem [resolvable:$true] %s47
      %53 = dma.hbm_to_vmem [thread:$0]  %s3, 1024, %s48, [#allocation6], 64, 64, 4
    $region17: #{tpu_custom_call.1} parent=1 // pred_fallthru
      _
    // Predicated region
    $region18: #{tpu_custom_call.1} parent=1 // pred_check
      _
    $region19: #{tpu_custom_call.1} parent=1 // pred_check_branch
      %55 = sbr.rel (0) target = $region21
    $region20: #{tpu_custom_call.1} parent=1 // pred_region
      _
    $region21: #{tpu_custom_call.1} parent=1 // pred_fallthru
      _
    // Predicated region
    $region22: #{tpu_custom_call.1} parent=1 // pred_check
      _
    $region23: #{tpu_custom_call.1} parent=1 // pred_check_branch
      %57 = sbr.rel (0) target = $region25
    $region24: #{tpu_custom_call.1} parent=1 // pred_region
      %s59 = ssub.s32 1024, 1024
      %60 = vsyncadd [#allocation9], %s59
      %s61 = sshll.u32 [#allocation8], 4
      %s62 = int_to_ptr.vmem [resolvable:$true] %s61
      %67 = dma.hbm_to_vmem [thread:$0]  %s5, 1024, %s62, [#allocation9], 64, 64, 4
    $region25: #{tpu_custom_call.1} parent=1 // pred_fallthru
      _
    // Predicated region
    $region26: #{tpu_custom_call.1} parent=1 // pred_check
      _
    $region27: #{tpu_custom_call.1} parent=1 // pred_check_branch
      %69 = sbr.rel (0) target = $region29
    $region28: #{tpu_custom_call.1} parent=1 // pred_region
      _
    $region29: #{tpu_custom_call.1} parent=1 // pred_fallthru
      _
    // Predicated region
    $region30: #{tpu_custom_call.1} parent=1 // pred_check
      _
    $region31: #{tpu_custom_call.1} parent=1 // pred_check_branch
      %71 = sbr.rel (0) target = $region33
    $region32: #{tpu_custom_call.1} parent=1 // pred_region
      %72 = dma.done [#allocation3], 128
    $region33: #{tpu_custom_call.1} parent=1 // pred_fallthru
      _
    // Predicated region
    $region34: #{tpu_custom_call.1} parent=1 // pred_check
      _
    $region35: #{tpu_custom_call.1} parent=1 // pred_check_branch
      %74 = sbr.rel (0) target = $region37
    $region36: #{tpu_custom_call.1} parent=1 // pred_region
      %75 = dma.done [#allocation6], 1024
    $region37: #{tpu_custom_call.1} parent=1 // pred_fallthru
      _
    // Predicated region
    $region38: #{tpu_custom_call.1} parent=1 // pred_check
      _
    $region39: #{tpu_custom_call.1} parent=1 // pred_check_branch
      %77 = sbr.rel (0) target = $region41
    $region40: #{tpu_custom_call.1} parent=1 // pred_region
      %78 = dma.done [#allocation6], 1024
    $region41: #{tpu_custom_call.1} parent=1 // pred_fallthru
      _
    // Predicated region
    $region42: #{tpu_custom_call.1} parent=1 // pred_check
      _
    $region43: #{tpu_custom_call.1} parent=1 // pred_check_branch
      %80 = sbr.rel (0) target = $region45
    $region44: #{tpu_custom_call.1} parent=1 // pred_region
      %81 = dma.done [#allocation9], 1024
    $region45: #{tpu_custom_call.1} parent=1 // pred_fallthru
      _
    %v83 = vld [vmem:[#allocation2] sm:$0xf]
    %v84 = vld [vmem:[#allocation2 + $0x4] sm:$0xf]
    %v85 = vld [vmem:[#allocation5] sm:$0xf]
    %v86 = vld [vmem:[#allocation5 + $0x4] sm:$0xf]
    %v87 = vld [vmem:[#allocation5 + $0x8] sm:$0xf]
    %v88 = vld [vmem:[#allocation5 + $0xc] sm:$0xf]
    %v89 = vld [vmem:[#allocation5 + $0x10] sm:$0xf]
    %v90 = vld [vmem:[#allocation5 + $0x14] sm:$0xf]
    %v91 = vld [vmem:[#allocation5 + $0x18] sm:$0xf]
    %v92 = vld [vmem:[#allocation5 + $0x1c] sm:$0xf]
    %v93 = vld [vmem:[#allocation5 + $0x20] sm:$0xf]
    %v94 = vld [vmem:[#allocation5 + $0x24] sm:$0xf]
    %v95 = vld [vmem:[#allocation5 + $0x28] sm:$0xf]
    %v96 = vld [vmem:[#allocation5 + $0x2c] sm:$0xf]
    %v97 = vld [vmem:[#allocation5 + $0x30] sm:$0xf]
    %v98 = vld [vmem:[#allocation5 + $0x34] sm:$0xf]
    %v99 = vld [vmem:[#allocation5 + $0x38] sm:$0xf]
    %v100 = vld [vmem:[#allocation5 + $0x3c] sm:$0xf]
    %v101 = vld [vmem:[%s2] sm:$0x1]
    %v103 = vlaneseq
    %v104 = vshrl.u32 %v103, 7
    %v105 = vsub.s32 0, %v104
    %v106 = vrot.slane %v101, %v105
    %v110 = vunpack.c.l.b16 %v83
    %v111 = vunpack.c.l.b16 %v84
    %v112 = vpack.c.b16 %v111, %v110
    %v130 = vunpack.c.l.b16 %v85
    %v131 = vunpack.c.l.b16 %v86
    %v132 = vunpack.c.l.b16 %v87
    %v133 = vunpack.c.l.b16 %v88
    %v134 = vunpack.c.l.b16 %v89
    %v135 = vunpack.c.l.b16 %v90
    %v136 = vunpack.c.l.b16 %v91
    %v137 = vunpack.c.l.b16 %v92
    %v138 = vunpack.c.l.b16 %v93
    %v139 = vunpack.c.l.b16 %v94
    %v140 = vunpack.c.l.b16 %v95
    %v141 = vunpack.c.l.b16 %v96
    %v142 = vunpack.c.l.b16 %v97
    %v143 = vunpack.c.l.b16 %v98
    %v144 = vunpack.c.l.b16 %v99
    %v145 = vunpack.c.l.b16 %v100
    %v146 = vpack.c.b16 %v131, %v130
    %v147 = vpack.c.b16 %v133, %v132
    %v148 = vpack.c.b16 %v135, %v134
    %v149 = vpack.c.b16 %v137, %v136
    %v150 = vpack.c.b16 %v139, %v138
    %v151 = vpack.c.b16 %v141, %v140
    %v152 = vpack.c.b16 %v143, %v142
    %v153 = vpack.c.b16 %v145, %v144
    %162 = vmatprep.subr.bf16.mxu0 0
    %163 = vmatpush1.bf16.msra.mxu0 %v146
    %164 = vmatprep.subr.bf16.mxu0 0
    %165 = vmatpush1.bf16.msra.mxu0 %v147
    %166 = vmatprep.subr.bf16.mxu0 0
    %167 = vmatpush1.bf16.msra.mxu0 %v148
    %168 = vmatprep.subr.bf16.mxu0 0
    %169 = vmatpush1.bf16.msra.mxu0 %v149
    %170 = vmatprep.subr.bf16.mxu0 0
    %171 = vmatpush1.bf16.msra.mxu0 %v150
    %172 = vmatprep.subr.bf16.mxu0 0
    %173 = vmatpush1.bf16.msra.mxu0 %v151
    %174 = vmatprep.subr.bf16.mxu0 0
    %175 = vmatpush1.bf16.msra.mxu0 %v152
    %176 = vmatprep.subr.bf16.mxu0 0
    %177 = vmatpush1.bf16.msra.mxu0 %v153
    %178 = vmatprep.subr.bf16.mxu0 0
    %179 = vmatpush1.bf16.msra.mxu0 0
    %180 = vmatprep.subr.bf16.mxu0 0
    %181 = vmatpush1.bf16.msra.mxu0 0
    %182 = vmatprep.subr.bf16.mxu0 0
    %183 = vmatpush1.bf16.msra.mxu0 0
    %184 = vmatprep.subr.bf16.mxu0 0
    %185 = vmatpush1.bf16.msra.mxu0 0
    %186 = vmatprep.subr.bf16.mxu0 0
    %187 = vmatpush1.bf16.msra.mxu0 0
    %188 = vmatprep.subr.bf16.mxu0 0
    %189 = vmatpush1.bf16.msra.mxu0 0
    %190 = vmatprep.subr.bf16.mxu0 0
    %191 = vmatpush1.bf16.msra.mxu0 0
    %192 = vmatprep.subr.bf16.mxu0 0
    %193 = vmatpush1.bf16.msra.mxu0 0
    %194 = vmatprep.mubr.bf16.mxu0 0
    %195 = vmatmul.mubr.bf16.gmra.mrb[0].mxu0 %v112
    %v196 = vpop.f32.mrb[0].mxu0
    %v197 = vadd.f32 %v106, %v196
    %v198 = vpop.f32.mrb[0].mxu0
    %v199 = vpop.f32.mrb[0].mxu0
    %v200 = vadd.f32 %v106, %v199
    %v201 = vpop.f32.mrb[0].mxu0
    %202 = vdwg.mxu0
    %v203 = vmul.f32 %v197, 0.01
    %v204 = vmul.f32 %v200, 0.01
    %v205 = vmax.f32 %v197, %v203
    %v206 = vmax.f32 %v200, %v204
    %v207 = vpack.c.bf16 %v206, %v205
    %v208 = vld [vmem:[#allocation7] sm:$0xf]
    %v209 = vld [vmem:[#allocation7 + $0x4] sm:$0xf]
    %v210 = vld [vmem:[#allocation7 + $0x8] sm:$0xf]
    %v211 = vld [vmem:[#allocation7 + $0xc] sm:$0xf]
    %v212 = vld [vmem:[#allocation7 + $0x10] sm:$0xf]
    %v213 = vld [vmem:[#allocation7 + $0x14] sm:$0xf]
    %v214 = vld [vmem:[#allocation7 + $0x18] sm:$0xf]
    %v215 = vld [vmem:[#allocation7 + $0x1c] sm:$0xf]
    %v216 = vld [vmem:[#allocation7 + $0x20] sm:$0xf]
    %v217 = vld [vmem:[#allocation7 + $0x24] sm:$0xf]
    %v218 = vld [vmem:[#allocation7 + $0x28] sm:$0xf]
    %v219 = vld [vmem:[#allocation7 + $0x2c] sm:$0xf]
    %v220 = vld [vmem:[#allocation7 + $0x30] sm:$0xf]
    %v221 = vld [vmem:[#allocation7 + $0x34] sm:$0xf]
    %v222 = vld [vmem:[#allocation7 + $0x38] sm:$0xf]
    %v223 = vld [vmem:[#allocation7 + $0x3c] sm:$0xf]
    %v224 = vld [vmem:[%s4] sm:$0x1]
    %v226 = vlaneseq
    %v227 = vshrl.u32 %v226, 7
    %v228 = vsub.s32 0, %v227
    %v229 = vrot.slane %v224, %v228
    %v247 = vunpack.c.l.b16 %v208
    %v248 = vunpack.c.l.b16 %v209
    %v249 = vunpack.c.l.b16 %v210
    %v250 = vunpack.c.l.b16 %v211
    %v251 = vunpack.c.l.b16 %v212
    %v252 = vunpack.c.l.b16 %v213
    %v253 = vunpack.c.l.b16 %v214
    %v254 = vunpack.c.l.b16 %v215
    %v255 = vunpack.c.l.b16 %v216
    %v256 = vunpack.c.l.b16 %v217
    %v257 = vunpack.c.l.b16 %v218
    %v258 = vunpack.c.l.b16 %v219
    %v259 = vunpack.c.l.b16 %v220
    %v260 = vunpack.c.l.b16 %v221
    %v261 = vunpack.c.l.b16 %v222
    %v262 = vunpack.c.l.b16 %v223
    %v263 = vpack.c.b16 %v248, %v247
    %v264 = vpack.c.b16 %v250, %v249
    %v265 = vpack.c.b16 %v252, %v251
    %v266 = vpack.c.b16 %v254, %v253
    %v267 = vpack.c.b16 %v256, %v255
    %v268 = vpack.c.b16 %v258, %v257
    %v269 = vpack.c.b16 %v260, %v259
    %v270 = vpack.c.b16 %v262, %v261
    %279 = vmatprep.subr.bf16.mxu0 0
    %280 = vmatpush1.bf16.msra.mxu0 %v263
    %281 = vmatprep.subr.bf16.mxu0 0
    %282 = vmatpush1.bf16.msra.mxu0 %v264
    %283 = vmatprep.subr.bf16.mxu0 0
    %284 = vmatpush1.bf16.msra.mxu0 %v265
    %285 = vmatprep.subr.bf16.mxu0 0
    %286 = vmatpush1.bf16.msra.mxu0 %v266
    %287 = vmatprep.subr.bf16.mxu0 0
    %288 = vmatpush1.bf16.msra.mxu0 %v267
    %289 = vmatprep.subr.bf16.mxu0 0
    %290 = vmatpush1.bf16.msra.mxu0 %v268
    %291 = vmatprep.subr.bf16.mxu0 0
    %292 = vmatpush1.bf16.msra.mxu0 %v269
    %293 = vmatprep.subr.bf16.mxu0 0
    %294 = vmatpush1.bf16.msra.mxu0 %v270
    %295 = vmatprep.subr.bf16.mxu0 0
    %296 = vmatpush1.bf16.msra.mxu0 0
    %297 = vmatprep.subr.bf16.mxu0 0
    %298 = vmatpush1.bf16.msra.mxu0 0
    %299 = vmatprep.subr.bf16.mxu0 0
    %300 = vmatpush1.bf16.msra.mxu0 0
    %301 = vmatprep.subr.bf16.mxu0 0
    %302 = vmatpush1.bf16.msra.mxu0 0
    %303 = vmatprep.subr.bf16.mxu0 0
    %304 = vmatpush1.bf16.msra.mxu0 0
    %305 = vmatprep.subr.bf16.mxu0 0
    %306 = vmatpush1.bf16.msra.mxu0 0
    %307 = vmatprep.subr.bf16.mxu0 0
    %308 = vmatpush1.bf16.msra.mxu0 0
    %309 = vmatprep.subr.bf16.mxu0 0
    %310 = vmatpush1.bf16.msra.mxu0 0
    %311 = vmatprep.mubr.bf16.mxu0 0
    %312 = vmatmul.mubr.bf16.gmra.mrb[0].mxu0 %v207
    %v313 = vpop.f32.mrb[0].mxu0
    %v314 = vadd.f32 %v229, %v313
    %v315 = vpop.f32.mrb[0].mxu0
    %v316 = vpop.f32.mrb[0].mxu0
    %v317 = vadd.f32 %v229, %v316
    %v318 = vpop.f32.mrb[0].mxu0
    %319 = vdwg.mxu0
    %v320 = vmul.f32 %v314, 0.01
    %v321 = vmul.f32 %v317, 0.01
    %v322 = vmax.f32 %v314, %v320
    %v323 = vmax.f32 %v317, %v321
    %v324 = vpack.c.bf16 %v323, %v322
    %v325 = vld [vmem:[#allocation8] sm:$0xf]
    %v326 = vld [vmem:[#allocation8 + $0x4] sm:$0xf]
    %v327 = vld [vmem:[#allocation8 + $0x8] sm:$0xf]
    %v328 = vld [vmem:[#allocation8 + $0xc] sm:$0xf]
    %v329 = vld [vmem:[#allocation8 + $0x10] sm:$0xf]
    %v330 = vld [vmem:[#allocation8 + $0x14] sm:$0xf]
    %v331 = vld [vmem:[#allocation8 + $0x18] sm:$0xf]
    %v332 = vld [vmem:[#allocation8 + $0x1c] sm:$0xf]
    %v333 = vld [vmem:[#allocation8 + $0x20] sm:$0xf]
    %v334 = vld [vmem:[#allocation8 + $0x24] sm:$0xf]
    %v335 = vld [vmem:[#allocation8 + $0x28] sm:$0xf]
    %v336 = vld [vmem:[#allocation8 + $0x2c] sm:$0xf]
    %v337 = vld [vmem:[#allocation8 + $0x30] sm:$0xf]
    %v338 = vld [vmem:[#allocation8 + $0x34] sm:$0xf]
    %v339 = vld [vmem:[#allocation8 + $0x38] sm:$0xf]
    %v340 = vld [vmem:[#allocation8 + $0x3c] sm:$0xf]
    %v341 = vld [vmem:[%s6] sm:$0x1]
    %v343 = vlaneseq
    %v344 = vshrl.u32 %v343, 7
    %v345 = vsub.s32 0, %v344
    %v346 = vrot.slane %v341, %v345
    %v364 = vunpack.c.l.b16 %v325
    %v365 = vunpack.c.l.b16 %v326
    %v366 = vunpack.c.l.b16 %v327
    %v367 = vunpack.c.l.b16 %v328
    %v368 = vunpack.c.l.b16 %v329
    %v369 = vunpack.c.l.b16 %v330
    %v370 = vunpack.c.l.b16 %v331
    %v371 = vunpack.c.l.b16 %v332
    %v372 = vunpack.c.l.b16 %v333
    %v373 = vunpack.c.l.b16 %v334
    %v374 = vunpack.c.l.b16 %v335
    %v375 = vunpack.c.l.b16 %v336
    %v376 = vunpack.c.l.b16 %v337
    %v377 = vunpack.c.l.b16 %v338
    %v378 = vunpack.c.l.b16 %v339
    %v379 = vunpack.c.l.b16 %v340
    %v380 = vpack.c.b16 %v365, %v364
    %v381 = vpack.c.b16 %v367, %v366
    %v382 = vpack.c.b16 %v369, %v368
    %v383 = vpack.c.b16 %v371, %v370
    %v384 = vpack.c.b16 %v373, %v372
    %v385 = vpack.c.b16 %v375, %v374
    %v386 = vpack.c.b16 %v377, %v376
    %v387 = vpack.c.b16 %v379, %v378
    %396 = vmatprep.subr.bf16.mxu0 0
    %397 = vmatpush1.bf16.msra.mxu0 %v380
    %398 = vmatprep.subr.bf16.mxu0 0
    %399 = vmatpush1.bf16.msra.mxu0 %v381
    %400 = vmatprep.subr.bf16.mxu0 0
    %401 = vmatpush1.bf16.msra.mxu0 %v382
    %402 = vmatprep.subr.bf16.mxu0 0
    %403 = vmatpush1.bf16.msra.mxu0 %v383
    %404 = vmatprep.subr.bf16.mxu0 0
    %405 = vmatpush1.bf16.msra.mxu0 %v384
    %406 = vmatprep.subr.bf16.mxu0 0
    %407 = vmatpush1.bf16.msra.mxu0 %v385
    %408 = vmatprep.subr.bf16.mxu0 0
    %409 = vmatpush1.bf16.msra.mxu0 %v386
    %410 = vmatprep.subr.bf16.mxu0 0
    %411 = vmatpush1.bf16.msra.mxu0 %v387
    %412 = vmatprep.subr.bf16.mxu0 0
    %413 = vmatpush1.bf16.msra.mxu0 0
    %414 = vmatprep.subr.bf16.mxu0 0
    %415 = vmatpush1.bf16.msra.mxu0 0
    %416 = vmatprep.subr.bf16.mxu0 0
    %417 = vmatpush1.bf16.msra.mxu0 0
    %418 = vmatprep.subr.bf16.mxu0 0
    %419 = vmatpush1.bf16.msra.mxu0 0
    %420 = vmatprep.subr.bf16.mxu0 0
    %421 = vmatpush1.bf16.msra.mxu0 0
    %422 = vmatprep.subr.bf16.mxu0 0
    %423 = vmatpush1.bf16.msra.mxu0 0
    %424 = vmatprep.subr.bf16.mxu0 0
    %425 = vmatpush1.bf16.msra.mxu0 0
    %426 = vmatprep.subr.bf16.mxu0 0
    %427 = vmatpush1.bf16.msra.mxu0 0
    %428 = vmatprep.mubr.bf16.mxu0 0
    %429 = vmatmul.mubr.bf16.gmra.mrb[0].mxu0 %v324
    %v430 = vpop.f32.mrb[0].mxu0
    %v431 = vadd.f32 %v346, %v430
    %v432 = vpop.f32.mrb[0].mxu0
    %v433 = vpop.f32.mrb[0].mxu0
    %v434 = vadd.f32 %v346, %v433
    %v435 = vpop.f32.mrb[0].mxu0
    %436 = vdwg.mxu0
    %437 = vst [vmem:[#allocation10] sm:$0xff] %v431
    %438 = vst [vmem:[#allocation10 + $0x8] sm:$0xff] %v434
    // Predicated region
    $region46: #{tpu_custom_call.1} parent=1 // pred_check
      _
    $region47: #{tpu_custom_call.1} parent=1 // pred_check_branch
      %440 = sbr.rel (0) target = $region49
    $region48: #{tpu_custom_call.1} parent=1 // pred_region
      %s442 = ssub.s32 256, 256
      %443 = vsyncadd [#allocation4], %s442
      %s444 = sshll.u32 [#allocation10], 4
      %s445 = int_to_ptr.vmem [resolvable:$true] %s444
      %450 = dma.vmem_to_hbm [thread:$0]  %s445, 256, %s7, [#allocation4], 128, 128, 8
    $region49: #{tpu_custom_call.1} parent=1 // pred_fallthru
      _
    // Predicated region
    $region50: #{tpu_custom_call.1} parent=1 // pred_check
      _
    $region51: #{tpu_custom_call.1} parent=1 // pred_check_branch
      %452 = sbr.rel (0) target = $region53
    $region52: #{tpu_custom_call.1} parent=1 // pred_region
      %453 = dma.done [#allocation4], 256
    $region53: #{tpu_custom_call.1} parent=1 // pred_fallthru
      _
    %454 = vsyncpa [#allocation3], 1
    %455 = vsyncpa [#allocation6], 1
    %456 = vsyncpa [#allocation9], 1
    %457 = vsyncpa [#allocation4], 1

</llo_original>
